<compile_context>
chip_gen: v5e
topology: v5e:2x2
jax: 0.10.0
libtpu: 0.0.40
codegen_flags: <defaults>
</compile_context>

<pallas_src>
import functools

import jax
import jax.numpy as jnp
from jax import lax
from jax.experimental import pallas as pl
from jax.experimental.pallas import tpu as pltpu


# ---------------------------------------------------------------------------
# Pass 1: per-tile batch-norm statistics.
#   y = w @ x_tile  (Cout, ts) f32 accumulation on the MXU
#   outputs: per-tile channel sum and per-tile *centered* second moment
#   (merged across tiles in the wrapper with Chan's parallel-variance formula).
# ---------------------------------------------------------------------------
def _stats_kernel(x_ref, w_ref, psum_ref, pm2_ref, *, S, ts):
    # x_ref: (1, Cin, ts) bf16, w_ref: (Cout, Cin) bf16
    y = jnp.dot(w_ref[...], x_ref[0], preferred_element_type=jnp.float32)  # (Cout, ts)
    cout = y.shape[0]

    if S % ts == 0:
        nf = jnp.float32(ts)
        tsum = jnp.sum(y, axis=1, keepdims=True)                  # (Cout, 1)
        d = y - tsum / nf
        tm2 = jnp.sum(d * d, axis=1, keepdims=True)               # (Cout, 1)
    else:
        # Ragged last spatial tile: mask out-of-range lanes (use where, so
        # garbage/NaN in the padded region cannot poison the sums).
        si = pl.program_id(1)
        rem = jnp.minimum(S - si * ts, ts)
        valid = lax.broadcasted_iota(jnp.int32, (cout, ts), 1) < rem
        nf = rem.astype(jnp.float32)
        ym = jnp.where(valid, y, 0.0)
        tsum = jnp.sum(ym, axis=1, keepdims=True)
        d = jnp.where(valid, ym - tsum / nf, 0.0)
        tm2 = jnp.sum(d * d, axis=1, keepdims=True)

    psum_ref[0, 0] = tsum
    pm2_ref[0, 0] = tm2


# ---------------------------------------------------------------------------
# Pass 2: recompute the 1x1 conv and fuse affine BN + ReLU.
#   out = max((w @ x_tile) * scale + shift, 0)
# scale/shift are per-channel (Cout, 1) and broadcast along the lane axis.
# ---------------------------------------------------------------------------
def _apply_kernel(x_ref, w_ref, scale_ref, shift_ref, o_ref):
    y = jnp.dot(w_ref[...], x_ref[0], preferred_element_type=jnp.float32)  # (Cout, ts)
    o_ref[0] = jnp.maximum(y * scale_ref[...] + shift_ref[...], 0.0).astype(o_ref.dtype)


def conv1x1_bn_relu(x_nchw, weight, gamma, beta, *, eps=1e-5):
    """Forward of nn.Conv2d(1x1, bias=False) -> nn.BatchNorm2d (training stats) -> ReLU.

    x_nchw: (N, Cin, H, W) f32
    weight: (Cout, Cin, 1, 1) f32 (PyTorch layout)
    gamma, beta: (Cout,) f32
    returns (N, Cout, H, W) f32
    """
    N, Cin, H, W = x_nchw.shape
    Cout = weight.shape[0]
    S = H * W
    M = N * S

    # Layout plumbing: contiguous (free) reshapes only, no transposes.
    # bf16 inputs for the MXU fast path; accumulation stays f32 in-kernel.
    x3d = x_nchw.reshape(N, Cin, S).astype(jnp.bfloat16)
    w2d = weight.reshape(Cout, Cin).astype(jnp.bfloat16)

    # Spatial (lane) tile: largest multiple of 128 whose double-buffered
    # working set (x tile bf16, out tile f32, single weight slab) fits a
    # budget safe for every generation's scoped-VMEM region (v7x has only
    # 64 MiB physical VMEM, 32 MiB scoped default).
    # TODO(synk): for very large Cout also tile the Cout axis (extra grid dim)
    # instead of only shrinking the spatial tile.
    budget = 16 * 1024 * 1024
    ts = 8192
    while ts > 128 and (2 * Cin * ts * 2 + 2 * Cout * ts * 4 + Cin * Cout * 2) > budget:
        ts //= 2
    if S <= ts:
        ts = S                       # full spatial extent in one lane tile
    T = pl.cdiv(S, ts)
    grid = (N, T)

    footprint = 2 * Cin * ts * 2 + 2 * Cout * ts * 4 + Cin * Cout * 2 + 16 * Cout * 4
    vmem_limit = int(min(max(2 * footprint + (8 << 20), 32 << 20), 48 << 20))

    cparams = pltpu.CompilerParams(
        dimension_semantics=("parallel", "parallel"),  # no resident accumulators
        vmem_limit_bytes=vmem_limit,
    )

    x_spec = pl.BlockSpec((1, Cin, ts), lambda n, t: (n, 0, t))
    # Loop-invariant weight: constant index_map + single buffer (saves VMEM).
    w_spec = pl.BlockSpec((Cout, Cin), lambda n, t: (0, 0),
                          pipeline_mode=pl.Buffered(1))

    # ---- pass 1: per-tile (sum, centered M2) statistics ---------------------
    psum, pm2 = pl.pallas_call(
        functools.partial(_stats_kernel, S=S, ts=ts),
        out_shape=(
            jax.ShapeDtypeStruct((N, T, Cout, 1), jnp.float32),
            jax.ShapeDtypeStruct((N, T, Cout, 1), jnp.float32),
        ),
        grid_spec=pltpu.PrefetchScalarGridSpec(
            num_scalar_prefetch=0,
            grid=grid,
            in_specs=[x_spec, w_spec],
            out_specs=[
                pl.BlockSpec((1, 1, Cout, 1), lambda n, t: (n, t, 0, 0)),
                pl.BlockSpec((1, 1, Cout, 1), lambda n, t: (n, t, 0, 0)),
            ],
        ),
        compiler_params=cparams,
    )(x3d, w2d)

    # ---- combine per-tile stats (tiny per-channel math; Chan's merge) -------
    counts = jnp.clip(S - jnp.arange(T) * ts, 0, ts).astype(jnp.float32)   # (T,)
    cnt = counts.reshape(1, T, 1, 1)
    tile_mean = psum / cnt
    mean = jnp.sum(psum, axis=(0, 1)) / jnp.float32(M)                     # (Cout, 1)
    var = jnp.sum(pm2 + cnt * (tile_mean - mean[None, None]) ** 2,
                  axis=(0, 1)) / jnp.float32(M)                            # biased, BN-style
    scale = gamma.reshape(Cout, 1) * lax.rsqrt(var + eps)
    shift = beta.reshape(Cout, 1) - mean * scale

    # ---- pass 2: recompute conv + fused BN + ReLU (no y HBM round trip) -----
    cs_spec = pl.BlockSpec((Cout, 1), lambda n, t: (0, 0),
                           pipeline_mode=pl.Buffered(1))
    out3d = pl.pallas_call(
        _apply_kernel,
        out_shape=jax.ShapeDtypeStruct((N, Cout, S), jnp.float32),
        grid_spec=pltpu.PrefetchScalarGridSpec(
            num_scalar_prefetch=0,
            grid=grid,
            in_specs=[x_spec, w_spec, cs_spec, cs_spec],
            out_specs=pl.BlockSpec((1, Cout, ts), lambda n, t: (n, 0, t)),
        ),
        compiler_params=cparams,
    )(x3d, w2d, scale.astype(jnp.float32), shift.astype(jnp.float32))

    return out3d.reshape(N, Cout, H, W)


if __name__ == "__main__":
    key = jax.random.PRNGKey(0)
    k_x, k_w = jax.random.split(key)

    N, Cin, H, W = 2, 4, 16, 16
    Cout = 8

    x = jax.random.normal(k_x, (N, Cin, H, W), dtype=jnp.float32)
    weight = 0.1 * jax.random.normal(k_w, (Cout, Cin, 1, 1), dtype=jnp.float32)
    gamma = jnp.ones((Cout,), dtype=jnp.float32)   # BatchNorm2d default affine
    beta = jnp.zeros((Cout,), dtype=jnp.float32)

    run = jax.jit(conv1x1_bn_relu)
    out = run(x, weight, gamma, beta)
    jax.block_until_ready(out)

    # Sanity check vs a pure-JAX reference of the same math (bf16-rounded inputs).
    xr = x.astype(jnp.bfloat16).astype(jnp.float32)
    wr = weight.reshape(Cout, Cin).astype(jnp.bfloat16).astype(jnp.float32)
    y_ref = jnp.einsum("oc,nchw->nohw", wr, xr)
    m = y_ref.mean(axis=(0, 2, 3), keepdims=True)
    v = y_ref.var(axis=(0, 2, 3), keepdims=True)
    ref = jnp.maximum((y_ref - m) * lax.rsqrt(v + 1e-5)
                      * gamma.reshape(1, Cout, 1, 1) + beta.reshape(1, Cout, 1, 1), 0.0)
    assert jnp.allclose(out, ref, atol=1e-2, rtol=1e-2), float(jnp.max(jnp.abs(out - ref)))

    print("KERNEL_OK")
</pallas_src>

<mosaic_0001>
module attributes {stable_mosaic.version = 11 : i64} {
  func.func @_stats_kernel(%arg0: i32, %arg1: i32, %arg2: memref<1x4x256xbf16, #tpu.memory_space<vmem>>, %arg3: memref<8x4xbf16, #tpu.memory_space<vmem>>, %arg4: memref<1x1x8x1xf32, #tpu.memory_space<vmem>>, %arg5: memref<1x1x8x1xf32, #tpu.memory_space<vmem>>) attributes {dimension_semantics = [#tpu.dimension_semantics<parallel>, #tpu.dimension_semantics<parallel>], iteration_bounds = array<i64: 2, 1>, scalar_prefetch = 0 : i64, scratch_operands = 0 : i64, tpu.core_type = #tpu.core_type<tc>, window_params = [{transform_indices = @transform_0, window_bounds = array<i64: 1, 4, 256>}, {pipeline_mode = #tpu.pipeline_mode<synchronous>, transform_indices = @transform_1, window_bounds = array<i64: 8, 4>}, {transform_indices = @transform_2, window_bounds = array<i64: 1, 1, 8, 1>}, {transform_indices = @transform_3, window_bounds = array<i64: 1, 1, 8, 1>}]} {
    %c0 = arith.constant 0 : index
    %c0_0 = arith.constant 0 : index
    %0 = vector.load %arg3[%c0, %c0_0] : memref<8x4xbf16, #tpu.memory_space<vmem>>, vector<8x4xbf16>
    %c0_1 = arith.constant 0 : index
    %c0_2 = arith.constant 0 : index
    %c0_3 = arith.constant 0 : index
    %1 = vector.load %arg2[%c0_1, %c0_2, %c0_3] : memref<1x4x256xbf16, #tpu.memory_space<vmem>>, vector<1x4x256xbf16>
    %2 = vector.shape_cast %1 : vector<1x4x256xbf16> to vector<4x256xbf16>
    %cst = arith.constant dense<0.000000e+00> : vector<8x256xf32>
    %3 = tpu.matmul %0, %2, %cst {dimension_numbers = #tpu.dot_dimension_numbers<[1], [0], [0], [1], [0, 0, 1, 1], [], []>} : vector<8x4xbf16>, vector<4x256xbf16>, vector<8x256xf32> -> vector<8x256xf32>
    %cst_4 = arith.constant dense<0.000000e+00> : vector<8xf32>
    %4 = vector.multi_reduction <add>, %3, %cst_4 [1] : vector<8x256xf32> to vector<8xf32>
    %5 = vector.shape_cast %4 : vector<8xf32> to vector<8x1xf32>
    %cst_5 = arith.constant 2.560000e+02 : f32
    %6 = vector.broadcast %cst_5 : f32 to vector<8x1xf32>
    %7 = arith.divf %5, %6 : vector<8x1xf32>
    %8 = vector.broadcast %7 : vector<8x1xf32> to vector<8x256xf32>
    %9 = arith.subf %3, %8 : vector<8x256xf32>
    %10 = arith.mulf %9, %9 : vector<8x256xf32>
    %cst_6 = arith.constant dense<0.000000e+00> : vector<8xf32>
    %11 = vector.multi_reduction <add>, %10, %cst_6 [1] : vector<8x256xf32> to vector<8xf32>
    %12 = vector.shape_cast %11 : vector<8xf32> to vector<8x1xf32>
    %c0_7 = arith.constant 0 : index
    %c0_8 = arith.constant 0 : index
    %c0_9 = arith.constant 0 : index
    %c0_10 = arith.constant 0 : index
    %13 = vector.load %arg4[%c0_7, %c0_8, %c0_9, %c0_10] : memref<1x1x8x1xf32, #tpu.memory_space<vmem>>, vector<1x1x8x1xf32>
    %14 = vector.shape_cast %13 : vector<1x1x8x1xf32> to vector<8x1xf32>
    %15 = vector.shape_cast %5 : vector<8x1xf32> to vector<1x1x8x1xf32>
    tpu.vector_store %arg4[%c0_7, %c0_8, %c0_9, %c0_10], %15 {strides = array<i32>} : memref<1x1x8x1xf32, #tpu.memory_space<vmem>>, vector<1x1x8x1xf32>,
    %c0_11 = arith.constant 0 : index
    %c0_12 = arith.constant 0 : index
    %c0_13 = arith.constant 0 : index
    %c0_14 = arith.constant 0 : index
    %16 = vector.load %arg5[%c0_11, %c0_12, %c0_13, %c0_14] : memref<1x1x8x1xf32, #tpu.memory_space<vmem>>, vector<1x1x8x1xf32>
    %17 = vector.shape_cast %16 : vector<1x1x8x1xf32> to vector<8x1xf32>
    %18 = vector.shape_cast %12 : vector<8x1xf32> to vector<1x1x8x1xf32>
    tpu.vector_store %arg5[%c0_11, %c0_12, %c0_13, %c0_14], %18 {strides = array<i32>} : memref<1x1x8x1xf32, #tpu.memory_space<vmem>>, vector<1x1x8x1xf32>,
    return
  }
  func.func @transform_0(%arg0: i32, %arg1: i32) -> (i32, i32, i32) {
    %c0_i32 = arith.constant 0 : i32
    %c0_i32_0 = arith.constant 0 : i32
    return %arg0, %c0_i32, %arg1 : i32, i32, i32
  }
  func.func @transform_1(%arg0: i32, %arg1: i32) -> (i32, i32) {
    %c0_i32 = arith.constant 0 : i32
    %c0_i32_0 = arith.constant 0 : i32
    %c0_i32_1 = arith.constant 0 : i32
    return %c0_i32, %c0_i32_0 : i32, i32
  }
  func.func @transform_2(%arg0: i32, %arg1: i32) -> (i32, i32, i32, i32) {
    %c0_i32 = arith.constant 0 : i32
    %c0_i32_0 = arith.constant 0 : i32
    %c0_i32_1 = arith.constant 0 : i32
    return %arg0, %arg1, %c0_i32, %c0_i32_0 : i32, i32, i32, i32
  }
  func.func @transform_3(%arg0: i32, %arg1: i32) -> (i32, i32, i32, i32) {
    %c0_i32 = arith.constant 0 : i32
    %c0_i32_0 = arith.constant 0 : i32
    %c0_i32_1 = arith.constant 0 : i32
    return %arg0, %arg1, %c0_i32, %c0_i32_0 : i32, i32, i32, i32
  }
}

module attributes {stable_mosaic.version = 11 : i64} {
  func.func @_apply_kernel(%arg0: i32, %arg1: i32, %arg2: memref<1x4x256xbf16, #tpu.memory_space<vmem>>, %arg3: memref<8x4xbf16, #tpu.memory_space<vmem>>, %arg4: memref<8x1xf32, #tpu.memory_space<vmem>>, %arg5: memref<8x1xf32, #tpu.memory_space<vmem>>, %arg6: memref<1x8x256xf32, #tpu.memory_space<vmem>>) attributes {dimension_semantics = [#tpu.dimension_semantics<parallel>, #tpu.dimension_semantics<parallel>], iteration_bounds = array<i64: 2, 1>, scalar_prefetch = 0 : i64, scratch_operands = 0 : i64, tpu.core_type = #tpu.core_type<tc>, window_params = [{transform_indices = @transform_0, window_bounds = array<i64: 1, 4, 256>}, {pipeline_mode = #tpu.pipeline_mode<synchronous>, transform_indices = @transform_1, window_bounds = array<i64: 8, 4>}, {pipeline_mode = #tpu.pipeline_mode<synchronous>, transform_indices = @transform_2, window_bounds = array<i64: 8, 1>}, {pipeline_mode = #tpu.pipeline_mode<synchronous>, transform_indices = @transform_3, window_bounds = array<i64: 8, 1>}, {transform_indices = @transform_4, window_bounds = array<i64: 1, 8, 256>}]} {
    %c0 = arith.constant 0 : index
    %c0_0 = arith.constant 0 : index
    %0 = vector.load %arg3[%c0, %c0_0] : memref<8x4xbf16, #tpu.memory_space<vmem>>, vector<8x4xbf16>
    %c0_1 = arith.constant 0 : index
    %c0_2 = arith.constant 0 : index
    %c0_3 = arith.constant 0 : index
    %1 = vector.load %arg2[%c0_1, %c0_2, %c0_3] : memref<1x4x256xbf16, #tpu.memory_space<vmem>>, vector<1x4x256xbf16>
    %2 = vector.shape_cast %1 : vector<1x4x256xbf16> to vector<4x256xbf16>
    %cst = arith.constant dense<0.000000e+00> : vector<8x256xf32>
    %3 = tpu.matmul %0, %2, %cst {dimension_numbers = #tpu.dot_dimension_numbers<[1], [0], [0], [1], [0, 0, 1, 1], [], []>} : vector<8x4xbf16>, vector<4x256xbf16>, vector<8x256xf32> -> vector<8x256xf32>
    %c0_4 = arith.constant 0 : index
    %c0_5 = arith.constant 0 : index
    %4 = vector.load %arg4[%c0_4, %c0_5] : memref<8x1xf32, #tpu.memory_space<vmem>>, vector<8x1xf32>
    %5 = vector.broadcast %4 : vector<8x1xf32> to vector<8x256xf32>
    %6 = arith.mulf %3, %5 : vector<8x256xf32>
    %c0_6 = arith.constant 0 : index
    %c0_7 = arith.constant 0 : index
    %7 = vector.load %arg5[%c0_6, %c0_7] : memref<8x1xf32, #tpu.memory_space<vmem>>, vector<8x1xf32>
    %8 = vector.broadcast %7 : vector<8x1xf32> to vector<8x256xf32>
    %9 = arith.addf %6, %8 : vector<8x256xf32>
    %cst_8 = arith.constant 0.000000e+00 : f32
    %10 = vector.broadcast %cst_8 : f32 to vector<8x256xf32>
    %11 = arith.maximumf %9, %10 : vector<8x256xf32>
    %c0_9 = arith.constant 0 : index
    %c0_10 = arith.constant 0 : index
    %c0_11 = arith.constant 0 : index
    %12 = vector.load %arg6[%c0_9, %c0_10, %c0_11] : memref<1x8x256xf32, #tpu.memory_space<vmem>>, vector<1x8x256xf32>
    %13 = vector.shape_cast %12 : vector<1x8x256xf32> to vector<8x256xf32>
    %14 = vector.shape_cast %11 : vector<8x256xf32> to vector<1x8x256xf32>
    tpu.vector_store %arg6[%c0_9, %c0_10, %c0_11], %14 {strides = array<i32>} : memref<1x8x256xf32, #tpu.memory_space<vmem>>, vector<1x8x256xf32>,
    return
  }
  func.func @transform_0(%arg0: i32, %arg1: i32) -> (i32, i32, i32) {
    %c0_i32 = arith.constant 0 : i32
    %c0_i32_0 = arith.constant 0 : i32
    return %arg0, %c0_i32, %arg1 : i32, i32, i32
  }
  func.func @transform_1(%arg0: i32, %arg1: i32) -> (i32, i32) {
    %c0_i32 = arith.constant 0 : i32
    %c0_i32_0 = arith.constant 0 : i32
    %c0_i32_1 = arith.constant 0 : i32
    return %c0_i32, %c0_i32_0 : i32, i32
  }
  func.func @transform_2(%arg0: i32, %arg1: i32) -> (i32, i32) {
    %c0_i32 = arith.constant 0 : i32
    %c0_i32_0 = arith.constant 0 : i32
    %c0_i32_1 = arith.constant 0 : i32
    return %c0_i32, %c0_i32_0 : i32, i32
  }
  func.func @transform_3(%arg0: i32, %arg1: i32) -> (i32, i32) {
    %c0_i32 = arith.constant 0 : i32
    %c0_i32_0 = arith.constant 0 : i32
    %c0_i32_1 = arith.constant 0 : i32
    return %c0_i32, %c0_i32_0 : i32, i32
  }
  func.func @transform_4(%arg0: i32, %arg1: i32) -> (i32, i32, i32) {
    %c0_i32 = arith.constant 0 : i32
    %c0_i32_0 = arith.constant 0 : i32
    return %arg0, %c0_i32, %arg1 : i32, i32, i32
  }
}

</mosaic_0001>

<llo_original>
// kernel: conv1x1_bn_relu.3
$region0: #{conv1x1_bn_relu.3}
  #allocation0 [shape = 'u32[]', space=smem, size = 0x4, offset = 0x4, fixed_abs, tag = 'smem constant byte address 0x4 - core index']
  #allocation1 [shape = 'u32[72,128]{1,0:T(1,128)}', space=vmem, size = 0x9000, scoped, tag = 'internal scratch']
  %s0 = inlined_call_operand.vmem [shape: bf16[2,4,256], index: 0, kind: input, shape index: {}]
  %s1 = inlined_call_operand.vmem [shape: bf16[8,4], index: 1, kind: input, shape index: {}]
  %s2 = inlined_call_operand.vmem [shape: f32[8,1], index: 2, kind: input, shape index: {}]
  %s3 = inlined_call_operand.vmem [shape: f32[8,1], index: 3, kind: input, shape index: {}]
  %s4 = inlined_call_operand.vmem [shape: f32[2,8,256], index: 4, kind: output, shape index: {}]
  %s5 = sld [smem:[#allocation0]]
  $region49: #{conv1x1_bn_relu.3} parent=0
    _
  %s7 = ssub.s32 1, %s5
  %s8 = scalar_select 0, %s7, %s5
  loop: start=0, step=1, limit=4
  $region2: #{conv1x1_bn_relu.3} parent=0 // loop_pre_header
    _
  $region3: #{conv1x1_bn_relu.3} parent=0 // loop_header
    %s10 = sphi 0, %s14
    %p11 = scmp.ge.s32.totalorder %s10, 4
    %s17 = sphi 0, %s29
    %s18 = sphi 0, %s25
    %s19 = sphi 0, %s17
    %s20 = sphi 0, %s18
    %s21 = sphi 0, %s19
    %s22 = sphi 0, %s20
    %s34 = sphi 0, %s36
    %s37 = sphi 0, %s34
    %s38 = sphi 0, %s37
    %s54 = sphi 0, %s38
    %s58 = sphi 0, %s58
    %s60 = sphi 0, %s58
    %s61 = sphi 0, %s60
    %s75 = sphi 0, %s61
    %s79 = sphi 0, %s79
    %s81 = sphi 0, %s79
    %s82 = sphi 0, %s81
    %s96 = sphi 0, %s82
    %s100 = sphi 0, %s100
    %s102 = sphi 0, %s100
    %s103 = sphi 0, %s102
    %s117 = sphi 0, %s103
    %s125 = sphi 0, %s127
    %s128 = sphi 0, %s125
    %s129 = sphi 0, %s128
    %s145 = sphi 0, %s129
  $region4: #{conv1x1_bn_relu.3} parent=0 // loop_header_branch
    %13 = sbr.rel (%p11) target = $region8
  $region5: #{conv1x1_bn_relu.3} parent=0 // loop_body
    %s15 = ssub.s32 %s10, 1
    %s16 = ssub.s32 %s10, 2
    %s23 = sadd.s32 1, %s18
    %p24 = scmp.ge.s32.totalorder %s23, 1
    %s25 = scalar_select %p24, 0, %s23
    %s26 = sadd.s32 1, %s17
    %s27 = scalar_select %p24, %s26, %s17
    %p28 = scmp.ge.s32.totalorder %s27, 2
    %s29 = scalar_select %p28, 0, %s27
    %s30 = ssub.s32 %s17, %s29
    %s31 = ssub.s32 %s18, %s25
    %s32 = sor.u32 %s30, %s31
    %p33 = scmp.eq.s32.totalorder %s32, 0
    %s35 = sadd.s32 %s34, 1
    %s36 = scalar_select %p33, %s34, %s35
    %p39 = pneg %p33
    %p40 = scmp.eq.s32.totalorder %s10, 1
    %p41 = por %p39, %p40
    %p42 = scmp.ne.s32.totalorder %s34, %s37
    %p43 = scmp.eq.s32.totalorder %s10, 0
    %p44 = por %p42, %p43
    %p45 = scmp.ne.s32.totalorder %s34, %s37
    %p46 = scmp.eq.s32.totalorder %s15, 1
    %p47 = por %p45, %p46
    %p48 = scmp.ne.s32.totalorder %s37, %s38
    %p49 = scmp.eq.s32.totalorder %s15, 0
    %p50 = por %p48, %p49
    %p51 = scmp.ne.s32.totalorder %s37, %s38
    %p52 = scmp.eq.s32.totalorder %s16, 1
    %p53 = por %p51, %p52
    %p55 = scmp.ne.s32.totalorder %s38, %s54
    %p56 = scmp.eq.s32.totalorder %s16, 0
    %p57 = por %p55, %p56
    %s59 = sadd.s32 %s58, 1
    %p62 = scmp.eq.s32.totalorder %s10, 1
    %p63 = scmp.ne.s32.totalorder %s58, %s60
    %p64 = scmp.eq.s32.totalorder %s10, 0
    %p65 = por %p63, %p64
    %p66 = scmp.ne.s32.totalorder %s58, %s60
    %p67 = scmp.eq.s32.totalorder %s15, 1
    %p68 = por %p66, %p67
    %p69 = scmp.ne.s32.totalorder %s60, %s61
    %p70 = scmp.eq.s32.totalorder %s15, 0
    %p71 = por %p69, %p70
    %p72 = scmp.ne.s32.totalorder %s60, %s61
    %p73 = scmp.eq.s32.totalorder %s16, 1
    %p74 = por %p72, %p73
    %p76 = scmp.ne.s32.totalorder %s61, %s75
    %p77 = scmp.eq.s32.totalorder %s16, 0
    %p78 = por %p76, %p77
    %s80 = sadd.s32 %s79, 1
    %p83 = scmp.eq.s32.totalorder %s10, 1
    %p84 = scmp.ne.s32.totalorder %s79, %s81
    %p85 = scmp.eq.s32.totalorder %s10, 0
    %p86 = por %p84, %p85
    %p87 = scmp.ne.s32.totalorder %s79, %s81
    %p88 = scmp.eq.s32.totalorder %s15, 1
    %p89 = por %p87, %p88
    %p90 = scmp.ne.s32.totalorder %s81, %s82
    %p91 = scmp.eq.s32.totalorder %s15, 0
    %p92 = por %p90, %p91
    %p93 = scmp.ne.s32.totalorder %s81, %s82
    %p94 = scmp.eq.s32.totalorder %s16, 1
    %p95 = por %p93, %p94
    %p97 = scmp.ne.s32.totalorder %s82, %s96
    %p98 = scmp.eq.s32.totalorder %s16, 0
    %p99 = por %p97, %p98
    %s101 = sadd.s32 %s100, 1
    %p104 = scmp.eq.s32.totalorder %s10, 1
    %p105 = scmp.ne.s32.totalorder %s100, %s102
    %p106 = scmp.eq.s32.totalorder %s10, 0
    %p107 = por %p105, %p106
    %p108 = scmp.ne.s32.totalorder %s100, %s102
    %p109 = scmp.eq.s32.totalorder %s15, 1
    %p110 = por %p108, %p109
    %p111 = scmp.ne.s32.totalorder %s102, %s103
    %p112 = scmp.eq.s32.totalorder %s15, 0
    %p113 = por %p111, %p112
    %p114 = scmp.ne.s32.totalorder %s102, %s103
    %p115 = scmp.eq.s32.totalorder %s16, 1
    %p116 = por %p114, %p115
    %p118 = scmp.ne.s32.totalorder %s103, %s117
    %p119 = scmp.eq.s32.totalorder %s16, 0
    %p120 = por %p118, %p119
    %s121 = ssub.s32 %s17, %s29
    %s122 = ssub.s32 %s18, %s25
    %s123 = sor.u32 %s121, %s122
    %p124 = scmp.eq.s32.totalorder %s123, 0
    %s126 = sadd.s32 %s125, 1
    %s127 = scalar_select %p124, %s125, %s126
    %p130 = pneg %p124
    %p131 = scmp.eq.s32.totalorder %s10, 1
    %p132 = por %p130, %p131
    %p133 = scmp.ne.s32.totalorder %s125, %s128
    %p134 = scmp.eq.s32.totalorder %s10, 0
    %p135 = por %p133, %p134
    %p136 = scmp.ne.s32.totalorder %s125, %s128
    %p137 = scmp.eq.s32.totalorder %s15, 1
    %p138 = por %p136, %p137
    %p139 = scmp.ne.s32.totalorder %s128, %s129
    %p140 = scmp.eq.s32.totalorder %s15, 0
    %p141 = por %p139, %p140
    %p142 = scmp.ne.s32.totalorder %s128, %s129
    %p143 = scmp.eq.s32.totalorder %s16, 1
    %p144 = por %p142, %p143
    %p146 = scmp.ne.s32.totalorder %s129, %s145
    %p147 = scmp.eq.s32.totalorder %s16, 0
    %p148 = por %p146, %p147
    %p149 = scmp.le.s32.totalorder 1, %s10
    %p150 = scmp.lt.s32.totalorder %s10, 3
    %p151 = pnand %p149, %p150
    %p152 = pneg %p151
    // Predicated region
    $region9: #{conv1x1_bn_relu.3} parent=5 // pred_check
      _
    $region10: #{conv1x1_bn_relu.3} parent=5 // pred_check_branch
      %154 = sbr.rel (%p151) target = $region12
    $region11: #{conv1x1_bn_relu.3} parent=5 // pred_region
      %s155 = ssub.s32 %s10, 1
      // Predicated region
      $region13: #{conv1x1_bn_relu.3} parent=11 // pred_check
        %p156 = pneg %p71
      $region14: #{conv1x1_bn_relu.3} parent=11 // pred_check_branch
        %158 = sbr.rel (%p156) target = $region16
      $region15: #{conv1x1_bn_relu.3} parent=11 // pred_region
        _
      $region16: #{conv1x1_bn_relu.3} parent=11 // pred_fallthru
        _
      // Predicated region
      $region17: #{conv1x1_bn_relu.3} parent=11 // pred_check
        %p159 = pneg %p92
      $region18: #{conv1x1_bn_relu.3} parent=11 // pred_check_branch
        %161 = sbr.rel (%p159) target = $region20
      $region19: #{conv1x1_bn_relu.3} parent=11 // pred_region
        _
      $region20: #{conv1x1_bn_relu.3} parent=11 // pred_fallthru
        _
      // Predicated region
      $region21: #{conv1x1_bn_relu.3} parent=11 // pred_check
        %p162 = pneg %p113
      $region22: #{conv1x1_bn_relu.3} parent=11 // pred_check_branch
        %164 = sbr.rel (%p162) target = $region24
      $region23: #{conv1x1_bn_relu.3} parent=11 // pred_region
        _
      $region24: #{conv1x1_bn_relu.3} parent=11 // pred_fallthru
        _
    $region12: #{conv1x1_bn_relu.3} parent=5 // pred_fallthru
      _
    %p165 = scmp.lt.s32.totalorder %s10, 2
    // Predicated region
    $region25: #{conv1x1_bn_relu.3} parent=5 // pred_check
      %p166 = pneg %p165
    $region26: #{conv1x1_bn_relu.3} parent=5 // pred_check_branch
      %168 = sbr.rel (%p166) target = $region28
    $region27: #{conv1x1_bn_relu.3} parent=5 // pred_region
      // Predicated region
      $region29: #{conv1x1_bn_relu.3} parent=27 // pred_check
        %p169 = pneg %p44
      $region30: #{conv1x1_bn_relu.3} parent=27 // pred_check_branch
        %171 = sbr.rel (%p169) target = $region32
      $region31: #{conv1x1_bn_relu.3} parent=27 // pred_region
        %s172 = smul.u32 2, %s18
        %p173 = scmp.lt.s32.totalorder %s17, 1
        %s174 = scalar_select %p173, %s17, 1
        %p175 = scmp.lt.s32.totalorder %s172, 1
        %s176 = scalar_select %p175, %s172, 1
        %s177 = smul.addr %s174, 2
        %s178 = sadd.s32 %s176, %s177
        %s179 = smul.addr %s178, 2
        %s180 = scalar_lea.vmem %s0, %s179
        %s181 = smul.u32 2, %s18
      $region32: #{conv1x1_bn_relu.3} parent=27 // pred_fallthru
        _
    $region28: #{conv1x1_bn_relu.3} parent=5 // pred_fallthru
      _
    %p182 = scmp.le.s32.totalorder 1, %s10
    %p183 = scmp.lt.s32.totalorder %s10, 3
    %p184 = pnand %p182, %p183
    %p185 = pneg %p184
    // Predicated region
    $region33: #{conv1x1_bn_relu.3} parent=5 // pred_check
      _
    $region34: #{conv1x1_bn_relu.3} parent=5 // pred_check_branch
      %187 = sbr.rel (%p184) target = $region36
    $region35: #{conv1x1_bn_relu.3} parent=5 // pred_region
      %s188 = ssub.s32 %s10, 1
      %s189 = smul.u32 2, %s20
      %p190 = scmp.lt.s32.totalorder %s19, 1
      %s191 = scalar_select %p190, %s19, 1
      %p192 = scmp.lt.s32.totalorder %s189, 1
      %s193 = scalar_select %p192, %s189, 1
      %s194 = smul.addr %s191, 2
      %s195 = sadd.s32 %s193, %s194
      %s196 = smul.addr %s195, 2
      %s197 = scalar_lea.vmem %s0, %s196
      %p198 = pneg %p50
      %p199 = pneg %p47
      %p200 = pneg %p71
      %p201 = pneg %p68
      %p202 = pneg %p92
      %p203 = pneg %p89
      %p204 = pneg %p113
      %p205 = pneg %p110
      %p206 = pneg %p141
      %p207 = pneg %p138
      %s208 = smul.u32 2, %s20
      %p209 = scmp.lt.s32.totalorder %s19, 1
      %s210 = scalar_select %p209, %s19, 1
      %p211 = scmp.lt.s32.totalorder %s208, 1
      %s212 = scalar_select %p211, %s208, 1
      %s213 = smul.addr %s210, 2
      %s214 = sadd.s32 %s212, %s213
      %s215 = smul.addr %s214, 8
      %s216 = scalar_lea.vmem %s4, %s215
      %s217 = smul.u32 2, %s20
      %p218 = scmp.lt.s32.totalorder %s19, 1
      %s219 = scalar_select %p218, %s19, 1
      %p220 = scmp.lt.s32.totalorder %s217, 1
      %s221 = scalar_select %p220, %s217, 1
      %s222 = smul.addr %s219, 2
      %s223 = sadd.s32 %s221, %s222
      %s224 = smul.addr %s223, 2
      %s225 = scalar_lea.vmem %s0, %s224
      %s226 = smul.u32 2, %s20
      %s227 = smul.u32 2, %s20
      %p228 = scmp.lt.s32.totalorder %s19, 1
      %s229 = scalar_select %p228, %s19, 1
      %p230 = scmp.lt.s32.totalorder %s227, 1
      %s231 = scalar_select %p230, %s227, 1
      %s232 = smul.addr %s229, 2
      %s233 = sadd.s32 %s231, %s232
      %s234 = smul.addr %s233, 8
      %s235 = scalar_lea.vmem %s4, %s234
      %s236 = smul.u32 2, %s20
      %v238 = vld [vmem:[%s1] sm:$0xf]
      %v239 = vld [vmem:[%s225] sm:$0xf]
      %241 = vst [vmem:[#allocation1] ss:$4 sm:$0xff] %v239
      %v242 = vld.sshfl [vmem:[#allocation1] sm:$0xff pattern:$0x73625140]
      %v243 = vld.sshfl [vmem:[#allocation1 + $0x8] sm:$0xff pattern:$0x73625140]
      %vm244 = vcmask 31744
      %v246 = vsel %vm244, %v238, 0
      %vm248 = vcmask 1041408
      %v249 = vsel %vm248, %v242, 0
      %v251 = vsel %vm248, %v243, 0
      %253 = vmatpush.bf16.msra.mxu0 0
      %254 = vmatpush.bf16.msra.mxu0 0
      %255 = vmatpush.bf16.msra.mxu0 0
      %256 = vmatpush.bf16.msra.mxu0 0
      %257 = vmatpush.bf16.msra.mxu0 0
      %258 = vmatpush.bf16.msra.mxu0 0
      %259 = vmatpush.bf16.msra.mxu0 0
      %260 = vmatpush.bf16.msra.mxu0 %v249
      %261 = vmatmul.bf16.gmra.mxu0 %v246
      %v262 = vpop.f32.mrf.mxu0
      %v263 = vadd.f32 0.0, %v262
      %v264 = vpop.f32.mrf.mxu0
      %265 = vdwg.mxu0
      %266 = vmatpush.bf16.msra.mxu0 0
      %267 = vmatpush.bf16.msra.mxu0 0
      %268 = vmatpush.bf16.msra.mxu0 0
      %269 = vmatpush.bf16.msra.mxu0 0
      %270 = vmatpush.bf16.msra.mxu0 0
      %271 = vmatpush.bf16.msra.mxu0 0
      %272 = vmatpush.bf16.msra.mxu0 0
      %273 = vmatpush.bf16.msra.mxu0 %v251
      %274 = vmatmul.bf16.gmra.mxu0 %v246
      %v275 = vpop.f32.mrf.mxu0
      %v276 = vadd.f32 0.0, %v275
      %v277 = vpop.f32.mrf.mxu0
      %278 = vdwg.mxu0
      %v279 = vld [vmem:[%s2] sm:$0xff]
      %281 = vset.pattern.permute.xlu0 0
      %282 = vperm.xlu0 %281, %v279
      %v283 = vpop.permute.xlu0 %282
      %v285 = vmul.f32 %v263, %v283
      %v286 = vmul.f32 %v276, %v283
      %v287 = vld [vmem:[%s3] sm:$0xff]
      %289 = vset.pattern.permute.xlu0 0
      %290 = vperm.xlu0 %289, %v287
      %v291 = vpop.permute.xlu0 %290
      %v293 = vadd.f32 %v285, %v291
      %v294 = vadd.f32 %v286, %v291
      %v295 = vmax.f32 %v293, 0.0
      %v296 = vmax.f32 %v294, 0.0
      %297 = vst [vmem:[%s235] sm:$0xff] %v295
      %298 = vst [vmem:[%s235 + $0x8] sm:$0xff] %v296
      %s299 = smul.u32 2, %s20
      %p300 = scmp.lt.s32.totalorder %s19, 1
      %s301 = scalar_select %p300, %s19, 1
      %p302 = scmp.lt.s32.totalorder %s299, 1
      %s303 = scalar_select %p302, %s299, 1
      %s304 = smul.addr %s301, 2
      %s305 = sadd.s32 %s303, %s304
      %s306 = smul.addr %s305, 8
      %s307 = scalar_lea.vmem %s4, %s306
      // Predicated region
      $region37: #{conv1x1_bn_relu.3} parent=35 // pred_check
        %p308 = pneg %p138
      $region38: #{conv1x1_bn_relu.3} parent=35 // pred_check_branch
        %310 = sbr.rel (%p308) target = $region40
      $region39: #{conv1x1_bn_relu.3} parent=35 // pred_region
        %s311 = smul.u32 2, %s20
      $region40: #{conv1x1_bn_relu.3} parent=35 // pred_fallthru
        _
    $region36: #{conv1x1_bn_relu.3} parent=5 // pred_fallthru
      _
    %p312 = scmp.le.s32.totalorder 2, %s10
    // Predicated region
    $region41: #{conv1x1_bn_relu.3} parent=5 // pred_check
      %p313 = pneg %p312
    $region42: #{conv1x1_bn_relu.3} parent=5 // pred_check_branch
      %315 = sbr.rel (%p313) target = $region44
    $region43: #{conv1x1_bn_relu.3} parent=5 // pred_region
      %s316 = ssub.s32 %s10, 2
      // Predicated region
      $region45: #{conv1x1_bn_relu.3} parent=43 // pred_check
        %p317 = pneg %p144
      $region46: #{conv1x1_bn_relu.3} parent=43 // pred_check_branch
        %319 = sbr.rel (%p317) target = $region48
      $region47: #{conv1x1_bn_relu.3} parent=43 // pred_region
        %s320 = smul.u32 2, %s22
        %p321 = scmp.lt.s32.totalorder %s21, 1
        %s322 = scalar_select %p321, %s21, 1
        %p323 = scmp.lt.s32.totalorder %s320, 1
        %s324 = scalar_select %p323, %s320, 1
        %s325 = smul.addr %s322, 2
        %s326 = sadd.s32 %s324, %s325
        %s327 = smul.addr %s326, 8
        %s328 = scalar_lea.vmem %s4, %s327
      $region48: #{conv1x1_bn_relu.3} parent=43 // pred_fallthru
        _
    $region44: #{conv1x1_bn_relu.3} parent=5 // pred_fallthru
      _
  $region6: #{conv1x1_bn_relu.3} parent=0 // loop_footer
    %s14 = sadd.s32 1, %s10
  $region7: #{conv1x1_bn_relu.3} parent=0 // loop_footer_branch
    %9 = sbr.rel target = $region3
  $region8: #{conv1x1_bn_relu.3} parent=0 // loop_exit
    _

// kernel: conv1x1_bn_relu.2
$region0: #{conv1x1_bn_relu.2}
  #allocation0 [shape = 'u32[]', space=smem, size = 0x4, offset = 0x4, fixed_abs, tag = 'smem constant byte address 0x4 - core index']
  #allocation1 [shape = 'u32[72,128]{1,0:T(1,128)}', space=vmem, size = 0x9000, scoped, tag = 'internal scratch']
  %s0 = inlined_call_operand.vmem [shape: bf16[2,4,256], index: 0, kind: input, shape index: {}]
  %s1 = inlined_call_operand.vmem [shape: bf16[8,4], index: 1, kind: input, shape index: {}]
  %s2 = inlined_call_operand.vmem [shape: f32[2,1,8,1], index: 2, kind: output, shape index: {0}]
  %s3 = inlined_call_operand.vmem [shape: f32[2,1,8,1], index: 3, kind: output, shape index: {1}]
  %4 = xla_tuple %s2, %s3
  %s5 = sld [smem:[#allocation0]]
  $region49: #{conv1x1_bn_relu.2} parent=0
    _
  %s7 = ssub.s32 1, %s5
  %s8 = scalar_select 0, %s7, %s5
  loop: start=0, step=1, limit=4
  $region2: #{conv1x1_bn_relu.2} parent=0 // loop_pre_header
    _
  $region3: #{conv1x1_bn_relu.2} parent=0 // loop_header
    %s10 = sphi 0, %s14
    %p11 = scmp.ge.s32.totalorder %s10, 4
    %s17 = sphi 0, %s29
    %s18 = sphi 0, %s25
    %s19 = sphi 0, %s17
    %s20 = sphi 0, %s18
    %s21 = sphi 0, %s19
    %s22 = sphi 0, %s20
    %s34 = sphi 0, %s36
    %s37 = sphi 0, %s34
    %s38 = sphi 0, %s37
    %s54 = sphi 0, %s38
    %s58 = sphi 0, %s58
    %s60 = sphi 0, %s58
    %s61 = sphi 0, %s60
    %s75 = sphi 0, %s61
    %s83 = sphi 0, %s85
    %s86 = sphi 0, %s83
    %s87 = sphi 0, %s86
    %s103 = sphi 0, %s87
    %s111 = sphi 0, %s113
    %s114 = sphi 0, %s111
    %s115 = sphi 0, %s114
    %s131 = sphi 0, %s115
  $region4: #{conv1x1_bn_relu.2} parent=0 // loop_header_branch
    %13 = sbr.rel (%p11) target = $region8
  $region5: #{conv1x1_bn_relu.2} parent=0 // loop_body
    %s15 = ssub.s32 %s10, 1
    %s16 = ssub.s32 %s10, 2
    %s23 = sadd.s32 1, %s18
    %p24 = scmp.ge.s32.totalorder %s23, 1
    %s25 = scalar_select %p24, 0, %s23
    %s26 = sadd.s32 1, %s17
    %s27 = scalar_select %p24, %s26, %s17
    %p28 = scmp.ge.s32.totalorder %s27, 2
    %s29 = scalar_select %p28, 0, %s27
    %s30 = ssub.s32 %s17, %s29
    %s31 = ssub.s32 %s18, %s25
    %s32 = sor.u32 %s30, %s31
    %p33 = scmp.eq.s32.totalorder %s32, 0
    %s35 = sadd.s32 %s34, 1
    %s36 = scalar_select %p33, %s34, %s35
    %p39 = pneg %p33
    %p40 = scmp.eq.s32.totalorder %s10, 1
    %p41 = por %p39, %p40
    %p42 = scmp.ne.s32.totalorder %s34, %s37
    %p43 = scmp.eq.s32.totalorder %s10, 0
    %p44 = por %p42, %p43
    %p45 = scmp.ne.s32.totalorder %s34, %s37
    %p46 = scmp.eq.s32.totalorder %s15, 1
    %p47 = por %p45, %p46
    %p48 = scmp.ne.s32.totalorder %s37, %s38
    %p49 = scmp.eq.s32.totalorder %s15, 0
    %p50 = por %p48, %p49
    %p51 = scmp.ne.s32.totalorder %s37, %s38
    %p52 = scmp.eq.s32.totalorder %s16, 1
    %p53 = por %p51, %p52
    %p55 = scmp.ne.s32.totalorder %s38, %s54
    %p56 = scmp.eq.s32.totalorder %s16, 0
    %p57 = por %p55, %p56
    %s59 = sadd.s32 %s58, 1
    %p62 = scmp.eq.s32.totalorder %s10, 1
    %p63 = scmp.ne.s32.totalorder %s58, %s60
    %p64 = scmp.eq.s32.totalorder %s10, 0
    %p65 = por %p63, %p64
    %p66 = scmp.ne.s32.totalorder %s58, %s60
    %p67 = scmp.eq.s32.totalorder %s15, 1
    %p68 = por %p66, %p67
    %p69 = scmp.ne.s32.totalorder %s60, %s61
    %p70 = scmp.eq.s32.totalorder %s15, 0
    %p71 = por %p69, %p70
    %p72 = scmp.ne.s32.totalorder %s60, %s61
    %p73 = scmp.eq.s32.totalorder %s16, 1
    %p74 = por %p72, %p73
    %p76 = scmp.ne.s32.totalorder %s61, %s75
    %p77 = scmp.eq.s32.totalorder %s16, 0
    %p78 = por %p76, %p77
    %s79 = ssub.s32 %s17, %s29
    %s80 = ssub.s32 %s18, %s25
    %s81 = sor.u32 %s79, %s80
    %p82 = scmp.eq.s32.totalorder %s81, 0
    %s84 = sadd.s32 %s83, 1
    %s85 = scalar_select %p82, %s83, %s84
    %p88 = pneg %p82
    %p89 = scmp.eq.s32.totalorder %s10, 1
    %p90 = por %p88, %p89
    %p91 = scmp.ne.s32.totalorder %s83, %s86
    %p92 = scmp.eq.s32.totalorder %s10, 0
    %p93 = por %p91, %p92
    %p94 = scmp.ne.s32.totalorder %s83, %s86
    %p95 = scmp.eq.s32.totalorder %s15, 1
    %p96 = por %p94, %p95
    %p97 = scmp.ne.s32.totalorder %s86, %s87
    %p98 = scmp.eq.s32.totalorder %s15, 0
    %p99 = por %p97, %p98
    %p100 = scmp.ne.s32.totalorder %s86, %s87
    %p101 = scmp.eq.s32.totalorder %s16, 1
    %p102 = por %p100, %p101
    %p104 = scmp.ne.s32.totalorder %s87, %s103
    %p105 = scmp.eq.s32.totalorder %s16, 0
    %p106 = por %p104, %p105
    %s107 = ssub.s32 %s17, %s29
    %s108 = ssub.s32 %s18, %s25
    %s109 = sor.u32 %s107, %s108
    %p110 = scmp.eq.s32.totalorder %s109, 0
    %s112 = sadd.s32 %s111, 1
    %s113 = scalar_select %p110, %s111, %s112
    %p116 = pneg %p110
    %p117 = scmp.eq.s32.totalorder %s10, 1
    %p118 = por %p116, %p117
    %p119 = scmp.ne.s32.totalorder %s111, %s114
    %p120 = scmp.eq.s32.totalorder %s10, 0
    %p121 = por %p119, %p120
    %p122 = scmp.ne.s32.totalorder %s111, %s114
    %p123 = scmp.eq.s32.totalorder %s15, 1
    %p124 = por %p122, %p123
    %p125 = scmp.ne.s32.totalorder %s114, %s115
    %p126 = scmp.eq.s32.totalorder %s15, 0
    %p127 = por %p125, %p126
    %p128 = scmp.ne.s32.totalorder %s114, %s115
    %p129 = scmp.eq.s32.totalorder %s16, 1
    %p130 = por %p128, %p129
    %p132 = scmp.ne.s32.totalorder %s115, %s131
    %p133 = scmp.eq.s32.totalorder %s16, 0
    %p134 = por %p132, %p133
    %p135 = scmp.le.s32.totalorder 1, %s10
    %p136 = scmp.lt.s32.totalorder %s10, 3
    %p137 = pnand %p135, %p136
    %p138 = pneg %p137
    // Predicated region
    $region9: #{conv1x1_bn_relu.2} parent=5 // pred_check
      _
    $region10: #{conv1x1_bn_relu.2} parent=5 // pred_check_branch
      %140 = sbr.rel (%p137) target = $region12
    $region11: #{conv1x1_bn_relu.2} parent=5 // pred_region
      %s141 = ssub.s32 %s10, 1
      // Predicated region
      $region13: #{conv1x1_bn_relu.2} parent=11 // pred_check
        %p142 = pneg %p71
      $region14: #{conv1x1_bn_relu.2} parent=11 // pred_check_branch
        %144 = sbr.rel (%p142) target = $region16
      $region15: #{conv1x1_bn_relu.2} parent=11 // pred_region
        _
      $region16: #{conv1x1_bn_relu.2} parent=11 // pred_fallthru
        _
    $region12: #{conv1x1_bn_relu.2} parent=5 // pred_fallthru
      _
    %p145 = scmp.lt.s32.totalorder %s10, 2
    // Predicated region
    $region17: #{conv1x1_bn_relu.2} parent=5 // pred_check
      %p146 = pneg %p145
    $region18: #{conv1x1_bn_relu.2} parent=5 // pred_check_branch
      %148 = sbr.rel (%p146) target = $region20
    $region19: #{conv1x1_bn_relu.2} parent=5 // pred_region
      // Predicated region
      $region21: #{conv1x1_bn_relu.2} parent=19 // pred_check
        %p149 = pneg %p44
      $region22: #{conv1x1_bn_relu.2} parent=19 // pred_check_branch
        %151 = sbr.rel (%p149) target = $region24
      $region23: #{conv1x1_bn_relu.2} parent=19 // pred_region
        %s152 = smul.u32 2, %s18
        %p153 = scmp.lt.s32.totalorder %s17, 1
        %s154 = scalar_select %p153, %s17, 1
        %p155 = scmp.lt.s32.totalorder %s152, 1
        %s156 = scalar_select %p155, %s152, 1
        %s157 = smul.addr %s154, 2
        %s158 = sadd.s32 %s156, %s157
        %s159 = smul.addr %s158, 2
        %s160 = scalar_lea.vmem %s0, %s159
        %s161 = smul.u32 2, %s18
      $region24: #{conv1x1_bn_relu.2} parent=19 // pred_fallthru
        _
    $region20: #{conv1x1_bn_relu.2} parent=5 // pred_fallthru
      _
    %p162 = scmp.le.s32.totalorder 1, %s10
    %p163 = scmp.lt.s32.totalorder %s10, 3
    %p164 = pnand %p162, %p163
    %p165 = pneg %p164
    // Predicated region
    $region25: #{conv1x1_bn_relu.2} parent=5 // pred_check
      _
    $region26: #{conv1x1_bn_relu.2} parent=5 // pred_check_branch
      %167 = sbr.rel (%p164) target = $region28
    $region27: #{conv1x1_bn_relu.2} parent=5 // pred_region
      %s168 = ssub.s32 %s10, 1
      %s169 = smul.u32 2, %s20
      %p170 = scmp.lt.s32.totalorder %s19, 1
      %s171 = scalar_select %p170, %s19, 1
      %p172 = scmp.lt.s32.totalorder %s169, 1
      %s173 = scalar_select %p172, %s169, 1
      %s174 = smul.addr %s171, 2
      %s175 = sadd.s32 %s173, %s174
      %s176 = smul.addr %s175, 2
      %s177 = scalar_lea.vmem %s0, %s176
      %p178 = pneg %p50
      %p179 = pneg %p47
      %p180 = pneg %p71
      %p181 = pneg %p68
      %p182 = pneg %p99
      %p183 = pneg %p96
      %p184 = scmp.lt.s32.totalorder %s19, 1
      %s185 = scalar_select %p184, %s19, 1
      %p186 = scmp.lt.s32.totalorder %s20, 0
      %s187 = scalar_select %p186, %s20, 0
      %s188 = sadd.s32 %s187, %s185
      %s189 = smul.addr %s188, 8
      %s190 = scalar_lea.vmem %s2, %s189
      %p191 = pneg %p127
      %p192 = pneg %p124
      %p193 = scmp.lt.s32.totalorder %s19, 1
      %s194 = scalar_select %p193, %s19, 1
      %p195 = scmp.lt.s32.totalorder %s20, 0
      %s196 = scalar_select %p195, %s20, 0
      %s197 = sadd.s32 %s196, %s194
      %s198 = smul.addr %s197, 8
      %s199 = scalar_lea.vmem %s3, %s198
      %s200 = smul.u32 2, %s20
      %p201 = scmp.lt.s32.totalorder %s19, 1
      %s202 = scalar_select %p201, %s19, 1
      %p203 = scmp.lt.s32.totalorder %s200, 1
      %s204 = scalar_select %p203, %s200, 1
      %s205 = smul.addr %s202, 2
      %s206 = sadd.s32 %s204, %s205
      %s207 = smul.addr %s206, 2
      %s208 = scalar_lea.vmem %s0, %s207
      %s209 = smul.u32 2, %s20
      %p210 = scmp.lt.s32.totalorder %s19, 1
      %s211 = scalar_select %p210, %s19, 1
      %p212 = scmp.lt.s32.totalorder %s20, 0
      %s213 = scalar_select %p212, %s20, 0
      %s214 = sadd.s32 %s213, %s211
      %s215 = smul.addr %s214, 8
      %s216 = scalar_lea.vmem %s2, %s215
      %p217 = scmp.lt.s32.totalorder %s19, 1
      %s218 = scalar_select %p217, %s19, 1
      %p219 = scmp.lt.s32.totalorder %s20, 0
      %s220 = scalar_select %p219, %s20, 0
      %s221 = sadd.s32 %s220, %s218
      %s222 = smul.addr %s221, 8
      %s223 = scalar_lea.vmem %s3, %s222
      %v225 = vld [vmem:[%s1] sm:$0xf]
      %v226 = vld [vmem:[%s208] sm:$0xf]
      %228 = vst [vmem:[#allocation1] ss:$4 sm:$0xff] %v226
      %v229 = vld.sshfl [vmem:[#allocation1] sm:$0xff pattern:$0x73625140]
      %v230 = vld.sshfl [vmem:[#allocation1 + $0x8] sm:$0xff pattern:$0x73625140]
      %vm231 = vcmask 31744
      %v233 = vsel %vm231, %v225, 0
      %vm235 = vcmask 1041408
      %v236 = vsel %vm235, %v229, 0
      %v238 = vsel %vm235, %v230, 0
      %240 = vmatpush.bf16.msra.mxu0 0
      %241 = vmatpush.bf16.msra.mxu0 0
      %242 = vmatpush.bf16.msra.mxu0 0
      %243 = vmatpush.bf16.msra.mxu0 0
      %244 = vmatpush.bf16.msra.mxu0 0
      %245 = vmatpush.bf16.msra.mxu0 0
      %246 = vmatpush.bf16.msra.mxu0 0
      %247 = vmatpush.bf16.msra.mxu0 %v236
      %248 = vmatmul.bf16.gmra.mxu0 %v233
      %v249 = vpop.f32.mrf.mxu0
      %v250 = vadd.f32 0.0, %v249
      %v251 = vpop.f32.mrf.mxu0
      %252 = vdwg.mxu0
      %253 = vmatpush.bf16.msra.mxu0 0
      %254 = vmatpush.bf16.msra.mxu0 0
      %255 = vmatpush.bf16.msra.mxu0 0
      %256 = vmatpush.bf16.msra.mxu0 0
      %257 = vmatpush.bf16.msra.mxu0 0
      %258 = vmatpush.bf16.msra.mxu0 0
      %259 = vmatpush.bf16.msra.mxu0 0
      %260 = vmatpush.bf16.msra.mxu0 %v238
      %261 = vmatmul.bf16.gmra.mxu0 %v233
      %v262 = vpop.f32.mrf.mxu0
      %v263 = vadd.f32 0.0, %v262
      %v264 = vpop.f32.mrf.mxu0
      %265 = vdwg.mxu0
      %v266 = vadd.f32 %v250, %v263
      %267 = vadd.xlane.f32.xlu0 %v266
      %v268 = vpop.xlane.xlu0 %267
      %v269 = vrcp.pop 256.0
      %v270 = vmul.f32 256.0, %v269
      %v271 = vsub.f32 1.0, %v270
      %v272 = vmul.f32 %v269, %v271
      %v273 = vadd.f32 %v269, %v272
      %vm274 = vweird.f32 %v269
      %v275 = vsel %vm274, %v269, %v273
      %v276 = vmul.f32 %v268, %v275
      %v277 = vsub.f32 %v250, %v276
      %v278 = vsub.f32 %v263, %v276
      %v279 = vmul.f32 %v277, %v277
      %v280 = vmul.f32 %v278, %v278
      %v281 = vadd.f32 %v279, %v280
      %282 = vadd.xlane.f32.xlu0 %v281
      %v283 = vpop.xlane.xlu0 %282
      %vm284 = vcmask 7168
      %285 = vst.msk [vmem:[%s216] sm:$0xff] %vm284, %v268
      %286 = vst.msk [vmem:[%s223] sm:$0xff] %vm284, %v283
      %p287 = scmp.lt.s32.totalorder %s19, 1
      %s288 = scalar_select %p287, %s19, 1
      %p289 = scmp.lt.s32.totalorder %s20, 0
      %s290 = scalar_select %p289, %s20, 0
      %s291 = sadd.s32 %s290, %s288
      %s292 = smul.addr %s291, 8
      %s293 = scalar_lea.vmem %s2, %s292
      %p294 = scmp.lt.s32.totalorder %s19, 1
      %s295 = scalar_select %p294, %s19, 1
      %p296 = scmp.lt.s32.totalorder %s20, 0
      %s297 = scalar_select %p296, %s20, 0
      %s298 = sadd.s32 %s297, %s295
      %s299 = smul.addr %s298, 8
      %s300 = scalar_lea.vmem %s3, %s299
      // Predicated region
      $region29: #{conv1x1_bn_relu.2} parent=27 // pred_check
        %p301 = pneg %p96
      $region30: #{conv1x1_bn_relu.2} parent=27 // pred_check_branch
        %303 = sbr.rel (%p301) target = $region32
      $region31: #{conv1x1_bn_relu.2} parent=27 // pred_region
        _
      $region32: #{conv1x1_bn_relu.2} parent=27 // pred_fallthru
        _
      // Predicated region
      $region33: #{conv1x1_bn_relu.2} parent=27 // pred_check
        %p304 = pneg %p124
      $region34: #{conv1x1_bn_relu.2} parent=27 // pred_check_branch
        %306 = sbr.rel (%p304) target = $region36
      $region35: #{conv1x1_bn_relu.2} parent=27 // pred_region
        _
      $region36: #{conv1x1_bn_relu.2} parent=27 // pred_fallthru
        _
    $region28: #{conv1x1_bn_relu.2} parent=5 // pred_fallthru
      _
    %p307 = scmp.le.s32.totalorder 2, %s10
    // Predicated region
    $region37: #{conv1x1_bn_relu.2} parent=5 // pred_check
      %p308 = pneg %p307
    $region38: #{conv1x1_bn_relu.2} parent=5 // pred_check_branch
      %310 = sbr.rel (%p308) target = $region40
    $region39: #{conv1x1_bn_relu.2} parent=5 // pred_region
      %s311 = ssub.s32 %s10, 2
      // Predicated region
      $region41: #{conv1x1_bn_relu.2} parent=39 // pred_check
        %p312 = pneg %p102
      $region42: #{conv1x1_bn_relu.2} parent=39 // pred_check_branch
        %314 = sbr.rel (%p312) target = $region44
      $region43: #{conv1x1_bn_relu.2} parent=39 // pred_region
        %p315 = scmp.lt.s32.totalorder %s21, 1
        %s316 = scalar_select %p315, %s21, 1
        %p317 = scmp.lt.s32.totalorder %s22, 0
        %s318 = scalar_select %p317, %s22, 0
        %s319 = sadd.s32 %s318, %s316
        %s320 = smul.addr %s319, 8
        %s321 = scalar_lea.vmem %s2, %s320
      $region44: #{conv1x1_bn_relu.2} parent=39 // pred_fallthru
        _
      // Predicated region
      $region45: #{conv1x1_bn_relu.2} parent=39 // pred_check
        %p322 = pneg %p130
      $region46: #{conv1x1_bn_relu.2} parent=39 // pred_check_branch
        %324 = sbr.rel (%p322) target = $region48
      $region47: #{conv1x1_bn_relu.2} parent=39 // pred_region
        %p325 = scmp.lt.s32.totalorder %s21, 1
        %s326 = scalar_select %p325, %s21, 1
        %p327 = scmp.lt.s32.totalorder %s22, 0
        %s328 = scalar_select %p327, %s22, 0
        %s329 = sadd.s32 %s328, %s326
        %s330 = smul.addr %s329, 8
        %s331 = scalar_lea.vmem %s3, %s330
      $region48: #{conv1x1_bn_relu.2} parent=39 // pred_fallthru
        _
    $region40: #{conv1x1_bn_relu.2} parent=5 // pred_fallthru
      _
  $region6: #{conv1x1_bn_relu.2} parent=0 // loop_footer
    %s14 = sadd.s32 1, %s10
  $region7: #{conv1x1_bn_relu.2} parent=0 // loop_footer_branch
    %9 = sbr.rel target = $region3
  $region8: #{conv1x1_bn_relu.2} parent=0 // loop_exit
    _

</llo_original>
